<compile_context>
chip_gen: v5e
topology: v5e:2x2
jax: 0.10.0
libtpu: 0.0.40
codegen_flags: <defaults>
</compile_context>

<pallas_src>
import functools

import jax
import jax.numpy as jnp
from jax.experimental import pallas as pl
from jax.experimental.pallas import tpu as pltpu

n_embd = 32
block_size = 8
n_heads = 4
head_size = n_embd // n_heads
LN_EPS = 1e-5


def _layer_norm(x, g, b):
    # PyTorch LayerNorm: biased variance, eps inside rsqrt.
    mu = jnp.mean(x, axis=-1, keepdims=True)
    var = jnp.mean((x - mu) ** 2, axis=-1, keepdims=True)
    return (x - mu) * jax.lax.rsqrt(var + LN_EPS) * g + b


def _block_kernel(x_ref, w_in_ref, w2_ref, vec_ref, o_ref, *, batch, seq):
    C = n_embd
    hs = head_size

    x = x_ref[...]                                   # (B*T, C), rows flattened

    vecs = vec_ref[...]                              # (8, 128): one vreg, one DMA
    ln1g, ln1b = vecs[0:1, :C], vecs[1:2, :C]
    ln2g, ln2b = vecs[2:3, :C], vecs[3:4, :C]
    bp, b2 = vecs[4:5, :C], vecs[5:6, :C]
    b1 = vecs[6:7, :]                                # (1, 4C)

    w_attn = w_in_ref[:, 0:4 * C]                    # (C, 4C) = [wq|wk|wv|wp]
    w1 = w_in_ref[:, 4 * C:8 * C]                    # (C, 4C)  (lane-tile-aligned slices)
    wp = w_attn[:, 3 * C:4 * C]                      # (C, C), hoisted, sliced once

    # ---- x = x + proj(heads(ln1(x))) ---------------------------------------
    xn = _layer_norm(x, ln1g, ln1b)
    # Fused Q/K/V projection (trailing wp columns are unused filler output;
    # N = 128 is a single MXU lane tile either way, so they cost nothing).
    qkv = jnp.dot(xn, w_attn, preferred_element_type=jnp.float32)   # (B*T, 4C)

    scale = C ** (-0.5)                              # reference uses n_embd**-0.5
    row = jax.lax.broadcasted_iota(jnp.int32, (seq, seq), 0)
    col = jax.lax.broadcasted_iota(jnp.int32, (seq, seq), 1)
    causal = row >= col
    neg_big = jnp.float32(-1e30)                     # finite: NaN-safe under full masking
    contract_last = (((1,), (1,)), ((), ()))         # q @ k^T without a transpose

    per_batch = []
    for b in range(batch):                           # static loops (B=2, H=4)
        rows = slice(b * seq, (b + 1) * seq)
        head_outs = []
        for h in range(n_heads):
            qh = qkv[rows, h * hs:(h + 1) * hs]
            kh = qkv[rows, C + h * hs:C + (h + 1) * hs]
            vh = qkv[rows, 2 * C + h * hs:2 * C + (h + 1) * hs]
            s = jax.lax.dot_general(qh, kh, contract_last,
                                    preferred_element_type=jnp.float32) * scale
            s = jnp.where(causal, s, neg_big)
            p = jnp.exp(s - jnp.max(s, axis=-1, keepdims=True))
            wei = p / jnp.sum(p, axis=-1, keepdims=True)        # exact divide
            # TODO(synk): nn.Dropout() omitted (eval-mode identity).
            head_outs.append(jnp.dot(wei, vh, preferred_element_type=jnp.float32))
        per_batch.append(jnp.concatenate(head_outs, axis=-1))   # (T, C)
    heads_cat = jnp.concatenate(per_batch, axis=0)               # (B*T, C)
    # Single output projection for all batches/heads + bias added once.
    x = x + jnp.dot(heads_cat, wp, preferred_element_type=jnp.float32) + bp

    # ---- x = x + W2 @ relu(W1 @ ln2(x)) -------------------------------------
    xn2 = _layer_norm(x, ln2g, ln2b)
    h1 = jnp.maximum(jnp.dot(xn2, w1, preferred_element_type=jnp.float32) + b1, 0.0)
    ff = jnp.dot(h1, w2_ref[...], preferred_element_type=jnp.float32) + b2

    o_ref[...] = x + ff


def _pack_params(p):
    """Host-side packing: 13 parameter tensors -> 3 kernel inputs."""
    # All weights with C input rows share one slab: [wq|wk|wv|wp|w1] = (C, 8C).
    w_in = jnp.concatenate([p["wq"], p["wk"], p["wv"], p["wp"], p["w1"]], axis=1)
    # All 1-D params packed into a single (8, 128) f32 vreg.
    vecs = jnp.zeros((8, 4 * n_embd), jnp.float32)
    vecs = vecs.at[0, :n_embd].set(p["ln1g"][0])
    vecs = vecs.at[1, :n_embd].set(p["ln1b"][0])
    vecs = vecs.at[2, :n_embd].set(p["ln2g"][0])
    vecs = vecs.at[3, :n_embd].set(p["ln2b"][0])
    vecs = vecs.at[4, :n_embd].set(p["bp"][0])
    vecs = vecs.at[5, :n_embd].set(p["b2"][0])
    vecs = vecs.at[6, :].set(p["b1"][0])
    return w_in, p["w2"], vecs


def block_forward(x, params):
    B, T, C = x.shape
    x2d = x.reshape(B * T, C)                        # flatten the row-wise path
    w_in, w2, vecs = _pack_params(params)

    vmem = pl.BlockSpec(memory_space=pltpu.MemorySpace.VMEM)
    out2d = pl.pallas_call(
        functools.partial(_block_kernel, batch=B, seq=T),
        out_shape=jax.ShapeDtypeStruct((B * T, C), x.dtype),
        in_specs=[vmem, vmem, vmem, vmem],           # 4 whole-array DMAs, no grid
        out_specs=vmem,
    )(x2d, w_in, w2, vecs)
    return out2d.reshape(B, T, C)


def init_params(key):
    ks = jax.random.split(key, 8)

    def lin(k, fan_in, shape):
        bound = 1.0 / (fan_in ** 0.5)
        return jax.random.uniform(k, shape, jnp.float32, -bound, bound)

    return {
        # per-head key/query/value Linears stacked column-wise -> (C, C)
        "wq": lin(ks[0], n_embd, (n_embd, n_heads * head_size)),
        "wk": lin(ks[1], n_embd, (n_embd, n_heads * head_size)),
        "wv": lin(ks[2], n_embd, (n_embd, n_heads * head_size)),
        "wp": lin(ks[3], n_embd, (n_embd, n_embd)),
        "bp": lin(ks[4], n_embd, (1, n_embd)),
        "ln1g": jnp.ones((1, n_embd), jnp.float32),
        "ln1b": jnp.zeros((1, n_embd), jnp.float32),
        "ln2g": jnp.ones((1, n_embd), jnp.float32),
        "ln2b": jnp.zeros((1, n_embd), jnp.float32),
        "w1": lin(ks[5], n_embd, (n_embd, 4 * n_embd)),
        "b1": lin(ks[6], n_embd, (1, 4 * n_embd)),
        "w2": lin(ks[7], 4 * n_embd, (4 * n_embd, n_embd)),
        "b2": jnp.zeros((1, n_embd), jnp.float32),
    }


def block_reference(x, p):
    """Pure-JAX reference for the correctness check."""
    def ln(x, g, b):
        mu = x.mean(-1, keepdims=True)
        var = ((x - mu) ** 2).mean(-1, keepdims=True)
        return (x - mu) / jnp.sqrt(var + LN_EPS) * g + b

    B, T, C = x.shape
    xn = ln(x, p["ln1g"], p["ln1b"])
    q = xn @ p["wq"]; k = xn @ p["wk"]; v = xn @ p["wv"]
    qh = q.reshape(B, T, n_heads, head_size).transpose(0, 2, 1, 3)
    kh = k.reshape(B, T, n_heads, head_size).transpose(0, 2, 1, 3)
    vh = v.reshape(B, T, n_heads, head_size).transpose(0, 2, 1, 3)
    wei = jnp.einsum("bhqd,bhkd->bhqk", qh, kh) * (C ** -0.5)
    mask = jnp.tril(jnp.ones((T, T), bool))
    wei = jnp.where(mask, wei, -jnp.inf)
    wei = jax.nn.softmax(wei, axis=-1)
    out = jnp.einsum("bhqk,bhkd->bhqd", wei, vh).transpose(0, 2, 1, 3).reshape(B, T, C)
    x = x + out @ p["wp"] + p["bp"]
    xn2 = ln(x, p["ln2g"], p["ln2b"])
    ff = jnp.maximum(xn2 @ p["w1"] + p["b1"], 0.0) @ p["w2"] + p["b2"]
    return x + ff


if __name__ == "__main__":
    key = jax.random.PRNGKey(0)
    k_x, k_p = jax.random.split(key)
    B, T, C = 2, block_size, n_embd           # (2, 8, 32)
    x = jax.random.normal(k_x, (B, T, C), jnp.float32)
    params = init_params(k_p)

    out = block_forward(x, params)
    out = jax.block_until_ready(out)

    ref = block_reference(x, params)
    assert out.shape == (B, T, C)
    # exact softmax divide -> tighter tolerance than before (covers only the
    # MXU-vs-XLA default matmul precision difference in the pure-JAX reference)
    assert jnp.allclose(out, ref, atol=1e-3, rtol=1e-3), "mismatch vs reference"
    print("KERNEL_OK")
</pallas_src>

<mosaic_0001>
module attributes {stable_mosaic.version = 11 : i64} {
  func.func @_block_kernel(%arg0: memref<16x32xf32, #tpu.memory_space<vmem>>, %arg1: memref<32x256xf32, #tpu.memory_space<vmem>>, %arg2: memref<128x32xf32, #tpu.memory_space<vmem>>, %arg3: memref<8x128xf32, #tpu.memory_space<vmem>>, %arg4: memref<16x32xf32, #tpu.memory_space<vmem>>) attributes {dimension_semantics = [], scalar_prefetch = 0 : i64, scratch_operands = 0 : i64, tpu.core_type = #tpu.core_type<tc>} {
    %c0 = arith.constant 0 : index
    %c0_0 = arith.constant 0 : index
    %0 = vector.load %arg0[%c0, %c0_0] : memref<16x32xf32, #tpu.memory_space<vmem>>, vector<16x32xf32>
    %c0_1 = arith.constant 0 : index
    %c0_2 = arith.constant 0 : index
    %1 = vector.load %arg3[%c0_1, %c0_2] : memref<8x128xf32, #tpu.memory_space<vmem>>, vector<8x128xf32>
    %2 = vector.extract_strided_slice %1 {offsets = [0, 0], sizes = [1, 32], strides = [1, 1]} : vector<8x128xf32> to vector<1x32xf32>
    %3 = vector.extract_strided_slice %1 {offsets = [1, 0], sizes = [1, 32], strides = [1, 1]} : vector<8x128xf32> to vector<1x32xf32>
    %4 = vector.extract_strided_slice %1 {offsets = [2, 0], sizes = [1, 32], strides = [1, 1]} : vector<8x128xf32> to vector<1x32xf32>
    %5 = vector.extract_strided_slice %1 {offsets = [3, 0], sizes = [1, 32], strides = [1, 1]} : vector<8x128xf32> to vector<1x32xf32>
    %6 = vector.extract_strided_slice %1 {offsets = [4, 0], sizes = [1, 32], strides = [1, 1]} : vector<8x128xf32> to vector<1x32xf32>
    %7 = vector.extract_strided_slice %1 {offsets = [5, 0], sizes = [1, 32], strides = [1, 1]} : vector<8x128xf32> to vector<1x32xf32>
    %8 = vector.extract_strided_slice %1 {offsets = [6, 0], sizes = [1, 128], strides = [1, 1]} : vector<8x128xf32> to vector<1x128xf32>
    %c0_3 = arith.constant 0 : index
    %c0_4 = arith.constant 0 : index
    %9 = vector.load %arg1[%c0_3, %c0_4] : memref<32x256xf32, #tpu.memory_space<vmem>>, vector<32x128xf32>
    %c0_5 = arith.constant 0 : index
    %c128 = arith.constant 128 : index
    %10 = vector.load %arg1[%c0_5, %c128] : memref<32x256xf32, #tpu.memory_space<vmem>>, vector<32x128xf32>
    %11 = vector.extract_strided_slice %9 {offsets = [0, 96], sizes = [32, 32], strides = [1, 1]} : vector<32x128xf32> to vector<32x32xf32>
    %cst = arith.constant dense<0.000000e+00> : vector<16xf32>
    %12 = vector.multi_reduction <add>, %0, %cst [1] : vector<16x32xf32> to vector<16xf32>
    %13 = vector.shape_cast %12 : vector<16xf32> to vector<16x1xf32>
    %cst_6 = arith.constant 3.200000e+01 : f32
    %14 = vector.broadcast %cst_6 : f32 to vector<16x1xf32>
    %15 = arith.divf %13, %14 : vector<16x1xf32>
    %16 = vector.broadcast %15 : vector<16x1xf32> to vector<16x32xf32>
    %17 = arith.subf %0, %16 : vector<16x32xf32>
    %18 = arith.mulf %17, %17 : vector<16x32xf32>
    %cst_7 = arith.constant dense<0.000000e+00> : vector<16xf32>
    %19 = vector.multi_reduction <add>, %18, %cst_7 [1] : vector<16x32xf32> to vector<16xf32>
    %20 = vector.shape_cast %19 : vector<16xf32> to vector<16x1xf32>
    %cst_8 = arith.constant 3.200000e+01 : f32
    %21 = vector.broadcast %cst_8 : f32 to vector<16x1xf32>
    %22 = arith.divf %20, %21 : vector<16x1xf32>
    %23 = vector.broadcast %15 : vector<16x1xf32> to vector<16x32xf32>
    %24 = arith.subf %0, %23 : vector<16x32xf32>
    %cst_9 = arith.constant 9.99999974E-6 : f32
    %25 = vector.broadcast %cst_9 : f32 to vector<16x1xf32>
    %26 = arith.addf %22, %25 : vector<16x1xf32>
    %27 = math.rsqrt %26 : vector<16x1xf32>
    %28 = vector.broadcast %27 : vector<16x1xf32> to vector<16x32xf32>
    %29 = arith.mulf %24, %28 : vector<16x32xf32>
    %30 = vector.broadcast %2 : vector<1x32xf32> to vector<16x32xf32>
    %31 = arith.mulf %29, %30 : vector<16x32xf32>
    %32 = vector.broadcast %3 : vector<1x32xf32> to vector<16x32xf32>
    %33 = arith.addf %31, %32 : vector<16x32xf32>
    %cst_10 = arith.constant dense<0.000000e+00> : vector<16x128xf32>
    %34 = tpu.matmul %33, %9, %cst_10 {dimension_numbers = #tpu.dot_dimension_numbers<[1], [0], [0], [1], [0, 0, 1, 1], [], []>} : vector<16x32xf32>, vector<32x128xf32>, vector<16x128xf32> -> vector<16x128xf32>
    %35 = tpu.iota {dimensions = array<i32: 0>} : vector<8x8xi32>
    %36 = tpu.iota {dimensions = array<i32: 1>} : vector<8x8xi32>
    %37 = arith.cmpi sge, %35, %36 : vector<8x8xi32>
    %38 = vector.extract_strided_slice %34 {offsets = [0, 0], sizes = [8, 8], strides = [1, 1]} : vector<16x128xf32> to vector<8x8xf32>
    %39 = vector.extract_strided_slice %34 {offsets = [0, 32], sizes = [8, 8], strides = [1, 1]} : vector<16x128xf32> to vector<8x8xf32>
    %40 = vector.extract_strided_slice %34 {offsets = [0, 64], sizes = [8, 8], strides = [1, 1]} : vector<16x128xf32> to vector<8x8xf32>
    %cst_11 = arith.constant dense<0.000000e+00> : vector<8x8xf32>
    %41 = tpu.matmul %38, %39, %cst_11 {dimension_numbers = #tpu.dot_dimension_numbers<[1], [1], [0], [0], [0, 0, 1, 0], [], []>} : vector<8x8xf32>, vector<8x8xf32>, vector<8x8xf32> -> vector<8x8xf32>
    %cst_12 = arith.constant 0.176776692 : f32
    %42 = vector.broadcast %cst_12 : f32 to vector<8x8xf32>
    %43 = arith.mulf %41, %42 : vector<8x8xf32>
    %cst_13 = arith.constant -1.000000e+30 : f32
    %44 = vector.broadcast %cst_13 : f32 to vector<8x8xf32>
    %45 = arith.select %37, %43, %44 : vector<8x8xi1>, vector<8x8xf32>
    %cst_14 = arith.constant dense<0xFF800000> : vector<8xf32>
    %46 = vector.multi_reduction <maximumf>, %45, %cst_14 [1] : vector<8x8xf32> to vector<8xf32>
    %47 = vector.shape_cast %46 : vector<8xf32> to vector<8x1xf32>
    %48 = vector.broadcast %47 : vector<8x1xf32> to vector<8x8xf32>
    %49 = arith.subf %45, %48 : vector<8x8xf32>
    %50 = math.exp %49 : vector<8x8xf32>
    %cst_15 = arith.constant dense<0.000000e+00> : vector<8xf32>
    %51 = vector.multi_reduction <add>, %50, %cst_15 [1] : vector<8x8xf32> to vector<8xf32>
    %52 = vector.shape_cast %51 : vector<8xf32> to vector<8x1xf32>
    %53 = vector.broadcast %52 : vector<8x1xf32> to vector<8x8xf32>
    %54 = arith.divf %50, %53 : vector<8x8xf32>
    %cst_16 = arith.constant dense<0.000000e+00> : vector<8x8xf32>
    %55 = tpu.matmul %54, %40, %cst_16 {dimension_numbers = #tpu.dot_dimension_numbers<[1], [0], [0], [1], [0, 0, 1, 1], [], []>} : vector<8x8xf32>, vector<8x8xf32>, vector<8x8xf32> -> vector<8x8xf32>
    %56 = vector.extract_strided_slice %34 {offsets = [0, 8], sizes = [8, 8], strides = [1, 1]} : vector<16x128xf32> to vector<8x8xf32>
    %57 = vector.extract_strided_slice %34 {offsets = [0, 40], sizes = [8, 8], strides = [1, 1]} : vector<16x128xf32> to vector<8x8xf32>
    %58 = vector.extract_strided_slice %34 {offsets = [0, 72], sizes = [8, 8], strides = [1, 1]} : vector<16x128xf32> to vector<8x8xf32>
    %cst_17 = arith.constant dense<0.000000e+00> : vector<8x8xf32>
    %59 = tpu.matmul %56, %57, %cst_17 {dimension_numbers = #tpu.dot_dimension_numbers<[1], [1], [0], [0], [0, 0, 1, 0], [], []>} : vector<8x8xf32>, vector<8x8xf32>, vector<8x8xf32> -> vector<8x8xf32>
    %cst_18 = arith.constant 0.176776692 : f32
    %60 = vector.broadcast %cst_18 : f32 to vector<8x8xf32>
    %61 = arith.mulf %59, %60 : vector<8x8xf32>
    %cst_19 = arith.constant -1.000000e+30 : f32
    %62 = vector.broadcast %cst_19 : f32 to vector<8x8xf32>
    %63 = arith.select %37, %61, %62 : vector<8x8xi1>, vector<8x8xf32>
    %cst_20 = arith.constant dense<0xFF800000> : vector<8xf32>
    %64 = vector.multi_reduction <maximumf>, %63, %cst_20 [1] : vector<8x8xf32> to vector<8xf32>
    %65 = vector.shape_cast %64 : vector<8xf32> to vector<8x1xf32>
    %66 = vector.broadcast %65 : vector<8x1xf32> to vector<8x8xf32>
    %67 = arith.subf %63, %66 : vector<8x8xf32>
    %68 = math.exp %67 : vector<8x8xf32>
    %cst_21 = arith.constant dense<0.000000e+00> : vector<8xf32>
    %69 = vector.multi_reduction <add>, %68, %cst_21 [1] : vector<8x8xf32> to vector<8xf32>
    %70 = vector.shape_cast %69 : vector<8xf32> to vector<8x1xf32>
    %71 = vector.broadcast %70 : vector<8x1xf32> to vector<8x8xf32>
    %72 = arith.divf %68, %71 : vector<8x8xf32>
    %cst_22 = arith.constant dense<0.000000e+00> : vector<8x8xf32>
    %73 = tpu.matmul %72, %58, %cst_22 {dimension_numbers = #tpu.dot_dimension_numbers<[1], [0], [0], [1], [0, 0, 1, 1], [], []>} : vector<8x8xf32>, vector<8x8xf32>, vector<8x8xf32> -> vector<8x8xf32>
    %74 = vector.extract_strided_slice %34 {offsets = [0, 16], sizes = [8, 8], strides = [1, 1]} : vector<16x128xf32> to vector<8x8xf32>
    %75 = vector.extract_strided_slice %34 {offsets = [0, 48], sizes = [8, 8], strides = [1, 1]} : vector<16x128xf32> to vector<8x8xf32>
    %76 = vector.extract_strided_slice %34 {offsets = [0, 80], sizes = [8, 8], strides = [1, 1]} : vector<16x128xf32> to vector<8x8xf32>
    %cst_23 = arith.constant dense<0.000000e+00> : vector<8x8xf32>
    %77 = tpu.matmul %74, %75, %cst_23 {dimension_numbers = #tpu.dot_dimension_numbers<[1], [1], [0], [0], [0, 0, 1, 0], [], []>} : vector<8x8xf32>, vector<8x8xf32>, vector<8x8xf32> -> vector<8x8xf32>
    %cst_24 = arith.constant 0.176776692 : f32
    %78 = vector.broadcast %cst_24 : f32 to vector<8x8xf32>
    %79 = arith.mulf %77, %78 : vector<8x8xf32>
    %cst_25 = arith.constant -1.000000e+30 : f32
    %80 = vector.broadcast %cst_25 : f32 to vector<8x8xf32>
    %81 = arith.select %37, %79, %80 : vector<8x8xi1>, vector<8x8xf32>
    %cst_26 = arith.constant dense<0xFF800000> : vector<8xf32>
    %82 = vector.multi_reduction <maximumf>, %81, %cst_26 [1] : vector<8x8xf32> to vector<8xf32>
    %83 = vector.shape_cast %82 : vector<8xf32> to vector<8x1xf32>
    %84 = vector.broadcast %83 : vector<8x1xf32> to vector<8x8xf32>
    %85 = arith.subf %81, %84 : vector<8x8xf32>
    %86 = math.exp %85 : vector<8x8xf32>
    %cst_27 = arith.constant dense<0.000000e+00> : vector<8xf32>
    %87 = vector.multi_reduction <add>, %86, %cst_27 [1] : vector<8x8xf32> to vector<8xf32>
    %88 = vector.shape_cast %87 : vector<8xf32> to vector<8x1xf32>
    %89 = vector.broadcast %88 : vector<8x1xf32> to vector<8x8xf32>
    %90 = arith.divf %86, %89 : vector<8x8xf32>
    %cst_28 = arith.constant dense<0.000000e+00> : vector<8x8xf32>
    %91 = tpu.matmul %90, %76, %cst_28 {dimension_numbers = #tpu.dot_dimension_numbers<[1], [0], [0], [1], [0, 0, 1, 1], [], []>} : vector<8x8xf32>, vector<8x8xf32>, vector<8x8xf32> -> vector<8x8xf32>
    %92 = vector.extract_strided_slice %34 {offsets = [0, 24], sizes = [8, 8], strides = [1, 1]} : vector<16x128xf32> to vector<8x8xf32>
    %93 = vector.extract_strided_slice %34 {offsets = [0, 56], sizes = [8, 8], strides = [1, 1]} : vector<16x128xf32> to vector<8x8xf32>
    %94 = vector.extract_strided_slice %34 {offsets = [0, 88], sizes = [8, 8], strides = [1, 1]} : vector<16x128xf32> to vector<8x8xf32>
    %cst_29 = arith.constant dense<0.000000e+00> : vector<8x8xf32>
    %95 = tpu.matmul %92, %93, %cst_29 {dimension_numbers = #tpu.dot_dimension_numbers<[1], [1], [0], [0], [0, 0, 1, 0], [], []>} : vector<8x8xf32>, vector<8x8xf32>, vector<8x8xf32> -> vector<8x8xf32>
    %cst_30 = arith.constant 0.176776692 : f32
    %96 = vector.broadcast %cst_30 : f32 to vector<8x8xf32>
    %97 = arith.mulf %95, %96 : vector<8x8xf32>
    %cst_31 = arith.constant -1.000000e+30 : f32
    %98 = vector.broadcast %cst_31 : f32 to vector<8x8xf32>
    %99 = arith.select %37, %97, %98 : vector<8x8xi1>, vector<8x8xf32>
    %cst_32 = arith.constant dense<0xFF800000> : vector<8xf32>
    %100 = vector.multi_reduction <maximumf>, %99, %cst_32 [1] : vector<8x8xf32> to vector<8xf32>
    %101 = vector.shape_cast %100 : vector<8xf32> to vector<8x1xf32>
    %102 = vector.broadcast %101 : vector<8x1xf32> to vector<8x8xf32>
    %103 = arith.subf %99, %102 : vector<8x8xf32>
    %104 = math.exp %103 : vector<8x8xf32>
    %cst_33 = arith.constant dense<0.000000e+00> : vector<8xf32>
    %105 = vector.multi_reduction <add>, %104, %cst_33 [1] : vector<8x8xf32> to vector<8xf32>
    %106 = vector.shape_cast %105 : vector<8xf32> to vector<8x1xf32>
    %107 = vector.broadcast %106 : vector<8x1xf32> to vector<8x8xf32>
    %108 = arith.divf %104, %107 : vector<8x8xf32>
    %cst_34 = arith.constant dense<0.000000e+00> : vector<8x8xf32>
    %109 = tpu.matmul %108, %94, %cst_34 {dimension_numbers = #tpu.dot_dimension_numbers<[1], [0], [0], [1], [0, 0, 1, 1], [], []>} : vector<8x8xf32>, vector<8x8xf32>, vector<8x8xf32> -> vector<8x8xf32>
    %110 = tpu.concatenate %55, %73, %91, %109 in 1 : vector<8x8xf32>, vector<8x8xf32>, vector<8x8xf32>, vector<8x8xf32> -> vector<8x32xf32>
    %111 = vector.extract_strided_slice %34 {offsets = [8, 0], sizes = [8, 8], strides = [1, 1]} : vector<16x128xf32> to vector<8x8xf32>
    %112 = vector.extract_strided_slice %34 {offsets = [8, 32], sizes = [8, 8], strides = [1, 1]} : vector<16x128xf32> to vector<8x8xf32>
    %113 = vector.extract_strided_slice %34 {offsets = [8, 64], sizes = [8, 8], strides = [1, 1]} : vector<16x128xf32> to vector<8x8xf32>
    %cst_35 = arith.constant dense<0.000000e+00> : vector<8x8xf32>
    %114 = tpu.matmul %111, %112, %cst_35 {dimension_numbers = #tpu.dot_dimension_numbers<[1], [1], [0], [0], [0, 0, 1, 0], [], []>} : vector<8x8xf32>, vector<8x8xf32>, vector<8x8xf32> -> vector<8x8xf32>
    %cst_36 = arith.constant 0.176776692 : f32
    %115 = vector.broadcast %cst_36 : f32 to vector<8x8xf32>
    %116 = arith.mulf %114, %115 : vector<8x8xf32>
    %cst_37 = arith.constant -1.000000e+30 : f32
    %117 = vector.broadcast %cst_37 : f32 to vector<8x8xf32>
    %118 = arith.select %37, %116, %117 : vector<8x8xi1>, vector<8x8xf32>
    %cst_38 = arith.constant dense<0xFF800000> : vector<8xf32>
    %119 = vector.multi_reduction <maximumf>, %118, %cst_38 [1] : vector<8x8xf32> to vector<8xf32>
    %120 = vector.shape_cast %119 : vector<8xf32> to vector<8x1xf32>
    %121 = vector.broadcast %120 : vector<8x1xf32> to vector<8x8xf32>
    %122 = arith.subf %118, %121 : vector<8x8xf32>
    %123 = math.exp %122 : vector<8x8xf32>
    %cst_39 = arith.constant dense<0.000000e+00> : vector<8xf32>
    %124 = vector.multi_reduction <add>, %123, %cst_39 [1] : vector<8x8xf32> to vector<8xf32>
    %125 = vector.shape_cast %124 : vector<8xf32> to vector<8x1xf32>
    %126 = vector.broadcast %125 : vector<8x1xf32> to vector<8x8xf32>
    %127 = arith.divf %123, %126 : vector<8x8xf32>
    %cst_40 = arith.constant dense<0.000000e+00> : vector<8x8xf32>
    %128 = tpu.matmul %127, %113, %cst_40 {dimension_numbers = #tpu.dot_dimension_numbers<[1], [0], [0], [1], [0, 0, 1, 1], [], []>} : vector<8x8xf32>, vector<8x8xf32>, vector<8x8xf32> -> vector<8x8xf32>
    %129 = vector.extract_strided_slice %34 {offsets = [8, 8], sizes = [8, 8], strides = [1, 1]} : vector<16x128xf32> to vector<8x8xf32>
    %130 = vector.extract_strided_slice %34 {offsets = [8, 40], sizes = [8, 8], strides = [1, 1]} : vector<16x128xf32> to vector<8x8xf32>
    %131 = vector.extract_strided_slice %34 {offsets = [8, 72], sizes = [8, 8], strides = [1, 1]} : vector<16x128xf32> to vector<8x8xf32>
    %cst_41 = arith.constant dense<0.000000e+00> : vector<8x8xf32>
    %132 = tpu.matmul %129, %130, %cst_41 {dimension_numbers = #tpu.dot_dimension_numbers<[1], [1], [0], [0], [0, 0, 1, 0], [], []>} : vector<8x8xf32>, vector<8x8xf32>, vector<8x8xf32> -> vector<8x8xf32>
    %cst_42 = arith.constant 0.176776692 : f32
    %133 = vector.broadcast %cst_42 : f32 to vector<8x8xf32>
    %134 = arith.mulf %132, %133 : vector<8x8xf32>
    %cst_43 = arith.constant -1.000000e+30 : f32
    %135 = vector.broadcast %cst_43 : f32 to vector<8x8xf32>
    %136 = arith.select %37, %134, %135 : vector<8x8xi1>, vector<8x8xf32>
    %cst_44 = arith.constant dense<0xFF800000> : vector<8xf32>
    %137 = vector.multi_reduction <maximumf>, %136, %cst_44 [1] : vector<8x8xf32> to vector<8xf32>
    %138 = vector.shape_cast %137 : vector<8xf32> to vector<8x1xf32>
    %139 = vector.broadcast %138 : vector<8x1xf32> to vector<8x8xf32>
    %140 = arith.subf %136, %139 : vector<8x8xf32>
    %141 = math.exp %140 : vector<8x8xf32>
    %cst_45 = arith.constant dense<0.000000e+00> : vector<8xf32>
    %142 = vector.multi_reduction <add>, %141, %cst_45 [1] : vector<8x8xf32> to vector<8xf32>
    %143 = vector.shape_cast %142 : vector<8xf32> to vector<8x1xf32>
    %144 = vector.broadcast %143 : vector<8x1xf32> to vector<8x8xf32>
    %145 = arith.divf %141, %144 : vector<8x8xf32>
    %cst_46 = arith.constant dense<0.000000e+00> : vector<8x8xf32>
    %146 = tpu.matmul %145, %131, %cst_46 {dimension_numbers = #tpu.dot_dimension_numbers<[1], [0], [0], [1], [0, 0, 1, 1], [], []>} : vector<8x8xf32>, vector<8x8xf32>, vector<8x8xf32> -> vector<8x8xf32>
    %147 = vector.extract_strided_slice %34 {offsets = [8, 16], sizes = [8, 8], strides = [1, 1]} : vector<16x128xf32> to vector<8x8xf32>
    %148 = vector.extract_strided_slice %34 {offsets = [8, 48], sizes = [8, 8], strides = [1, 1]} : vector<16x128xf32> to vector<8x8xf32>
    %149 = vector.extract_strided_slice %34 {offsets = [8, 80], sizes = [8, 8], strides = [1, 1]} : vector<16x128xf32> to vector<8x8xf32>
    %cst_47 = arith.constant dense<0.000000e+00> : vector<8x8xf32>
    %150 = tpu.matmul %147, %148, %cst_47 {dimension_numbers = #tpu.dot_dimension_numbers<[1], [1], [0], [0], [0, 0, 1, 0], [], []>} : vector<8x8xf32>, vector<8x8xf32>, vector<8x8xf32> -> vector<8x8xf32>
    %cst_48 = arith.constant 0.176776692 : f32
    %151 = vector.broadcast %cst_48 : f32 to vector<8x8xf32>
    %152 = arith.mulf %150, %151 : vector<8x8xf32>
    %cst_49 = arith.constant -1.000000e+30 : f32
    %153 = vector.broadcast %cst_49 : f32 to vector<8x8xf32>
    %154 = arith.select %37, %152, %153 : vector<8x8xi1>, vector<8x8xf32>
    %cst_50 = arith.constant dense<0xFF800000> : vector<8xf32>
    %155 = vector.multi_reduction <maximumf>, %154, %cst_50 [1] : vector<8x8xf32> to vector<8xf32>
    %156 = vector.shape_cast %155 : vector<8xf32> to vector<8x1xf32>
    %157 = vector.broadcast %156 : vector<8x1xf32> to vector<8x8xf32>
    %158 = arith.subf %154, %157 : vector<8x8xf32>
    %159 = math.exp %158 : vector<8x8xf32>
    %cst_51 = arith.constant dense<0.000000e+00> : vector<8xf32>
    %160 = vector.multi_reduction <add>, %159, %cst_51 [1] : vector<8x8xf32> to vector<8xf32>
    %161 = vector.shape_cast %160 : vector<8xf32> to vector<8x1xf32>
    %162 = vector.broadcast %161 : vector<8x1xf32> to vector<8x8xf32>
    %163 = arith.divf %159, %162 : vector<8x8xf32>
    %cst_52 = arith.constant dense<0.000000e+00> : vector<8x8xf32>
    %164 = tpu.matmul %163, %149, %cst_52 {dimension_numbers = #tpu.dot_dimension_numbers<[1], [0], [0], [1], [0, 0, 1, 1], [], []>} : vector<8x8xf32>, vector<8x8xf32>, vector<8x8xf32> -> vector<8x8xf32>
    %165 = vector.extract_strided_slice %34 {offsets = [8, 24], sizes = [8, 8], strides = [1, 1]} : vector<16x128xf32> to vector<8x8xf32>
    %166 = vector.extract_strided_slice %34 {offsets = [8, 56], sizes = [8, 8], strides = [1, 1]} : vector<16x128xf32> to vector<8x8xf32>
    %167 = vector.extract_strided_slice %34 {offsets = [8, 88], sizes = [8, 8], strides = [1, 1]} : vector<16x128xf32> to vector<8x8xf32>
    %cst_53 = arith.constant dense<0.000000e+00> : vector<8x8xf32>
    %168 = tpu.matmul %165, %166, %cst_53 {dimension_numbers = #tpu.dot_dimension_numbers<[1], [1], [0], [0], [0, 0, 1, 0], [], []>} : vector<8x8xf32>, vector<8x8xf32>, vector<8x8xf32> -> vector<8x8xf32>
    %cst_54 = arith.constant 0.176776692 : f32
    %169 = vector.broadcast %cst_54 : f32 to vector<8x8xf32>
    %170 = arith.mulf %168, %169 : vector<8x8xf32>
    %cst_55 = arith.constant -1.000000e+30 : f32
    %171 = vector.broadcast %cst_55 : f32 to vector<8x8xf32>
    %172 = arith.select %37, %170, %171 : vector<8x8xi1>, vector<8x8xf32>
    %cst_56 = arith.constant dense<0xFF800000> : vector<8xf32>
    %173 = vector.multi_reduction <maximumf>, %172, %cst_56 [1] : vector<8x8xf32> to vector<8xf32>
    %174 = vector.shape_cast %173 : vector<8xf32> to vector<8x1xf32>
    %175 = vector.broadcast %174 : vector<8x1xf32> to vector<8x8xf32>
    %176 = arith.subf %172, %175 : vector<8x8xf32>
    %177 = math.exp %176 : vector<8x8xf32>
    %cst_57 = arith.constant dense<0.000000e+00> : vector<8xf32>
    %178 = vector.multi_reduction <add>, %177, %cst_57 [1] : vector<8x8xf32> to vector<8xf32>
    %179 = vector.shape_cast %178 : vector<8xf32> to vector<8x1xf32>
    %180 = vector.broadcast %179 : vector<8x1xf32> to vector<8x8xf32>
    %181 = arith.divf %177, %180 : vector<8x8xf32>
    %cst_58 = arith.constant dense<0.000000e+00> : vector<8x8xf32>
    %182 = tpu.matmul %181, %167, %cst_58 {dimension_numbers = #tpu.dot_dimension_numbers<[1], [0], [0], [1], [0, 0, 1, 1], [], []>} : vector<8x8xf32>, vector<8x8xf32>, vector<8x8xf32> -> vector<8x8xf32>
    %183 = tpu.concatenate %128, %146, %164, %182 in 1 : vector<8x8xf32>, vector<8x8xf32>, vector<8x8xf32>, vector<8x8xf32> -> vector<8x32xf32>
    %184 = tpu.concatenate %110, %183 in 0 : vector<8x32xf32>, vector<8x32xf32> -> vector<16x32xf32>
    %cst_59 = arith.constant dense<0.000000e+00> : vector<16x32xf32>
    %185 = tpu.matmul %184, %11, %cst_59 {dimension_numbers = #tpu.dot_dimension_numbers<[1], [0], [0], [1], [0, 0, 1, 1], [], []>} : vector<16x32xf32>, vector<32x32xf32>, vector<16x32xf32> -> vector<16x32xf32>
    %186 = arith.addf %0, %185 : vector<16x32xf32>
    %187 = vector.broadcast %6 : vector<1x32xf32> to vector<16x32xf32>
    %188 = arith.addf %186, %187 : vector<16x32xf32>
    %cst_60 = arith.constant dense<0.000000e+00> : vector<16xf32>
    %189 = vector.multi_reduction <add>, %188, %cst_60 [1] : vector<16x32xf32> to vector<16xf32>
    %190 = vector.shape_cast %189 : vector<16xf32> to vector<16x1xf32>
    %cst_61 = arith.constant 3.200000e+01 : f32
    %191 = vector.broadcast %cst_61 : f32 to vector<16x1xf32>
    %192 = arith.divf %190, %191 : vector<16x1xf32>
    %193 = vector.broadcast %192 : vector<16x1xf32> to vector<16x32xf32>
    %194 = arith.subf %188, %193 : vector<16x32xf32>
    %195 = arith.mulf %194, %194 : vector<16x32xf32>
    %cst_62 = arith.constant dense<0.000000e+00> : vector<16xf32>
    %196 = vector.multi_reduction <add>, %195, %cst_62 [1] : vector<16x32xf32> to vector<16xf32>
    %197 = vector.shape_cast %196 : vector<16xf32> to vector<16x1xf32>
    %cst_63 = arith.constant 3.200000e+01 : f32
    %198 = vector.broadcast %cst_63 : f32 to vector<16x1xf32>
    %199 = arith.divf %197, %198 : vector<16x1xf32>
    %200 = vector.broadcast %192 : vector<16x1xf32> to vector<16x32xf32>
    %201 = arith.subf %188, %200 : vector<16x32xf32>
    %cst_64 = arith.constant 9.99999974E-6 : f32
    %202 = vector.broadcast %cst_64 : f32 to vector<16x1xf32>
    %203 = arith.addf %199, %202 : vector<16x1xf32>
    %204 = math.rsqrt %203 : vector<16x1xf32>
    %205 = vector.broadcast %204 : vector<16x1xf32> to vector<16x32xf32>
    %206 = arith.mulf %201, %205 : vector<16x32xf32>
    %207 = vector.broadcast %4 : vector<1x32xf32> to vector<16x32xf32>
    %208 = arith.mulf %206, %207 : vector<16x32xf32>
    %209 = vector.broadcast %5 : vector<1x32xf32> to vector<16x32xf32>
    %210 = arith.addf %208, %209 : vector<16x32xf32>
    %cst_65 = arith.constant dense<0.000000e+00> : vector<16x128xf32>
    %211 = tpu.matmul %210, %10, %cst_65 {dimension_numbers = #tpu.dot_dimension_numbers<[1], [0], [0], [1], [0, 0, 1, 1], [], []>} : vector<16x32xf32>, vector<32x128xf32>, vector<16x128xf32> -> vector<16x128xf32>
    %212 = vector.broadcast %8 : vector<1x128xf32> to vector<16x128xf32>
    %213 = arith.addf %211, %212 : vector<16x128xf32>
    %cst_66 = arith.constant 0.000000e+00 : f32
    %214 = vector.broadcast %cst_66 : f32 to vector<16x128xf32>
    %215 = arith.maximumf %213, %214 : vector<16x128xf32>
    %c0_67 = arith.constant 0 : index
    %c0_68 = arith.constant 0 : index
    %216 = vector.load %arg2[%c0_67, %c0_68] : memref<128x32xf32, #tpu.memory_space<vmem>>, vector<128x32xf32>
    %cst_69 = arith.constant dense<0.000000e+00> : vector<16x32xf32>
    %217 = tpu.matmul %215, %216, %cst_69 {dimension_numbers = #tpu.dot_dimension_numbers<[1], [0], [0], [1], [0, 0, 1, 1], [], []>} : vector<16x128xf32>, vector<128x32xf32>, vector<16x32xf32> -> vector<16x32xf32>
    %218 = vector.broadcast %7 : vector<1x32xf32> to vector<16x32xf32>
    %219 = arith.addf %217, %218 : vector<16x32xf32>
    %220 = arith.addf %188, %219 : vector<16x32xf32>
    %c0_70 = arith.constant 0 : index
    %c0_71 = arith.constant 0 : index
    %221 = vector.load %arg4[%c0_70, %c0_71] : memref<16x32xf32, #tpu.memory_space<vmem>>, vector<16x32xf32>
    tpu.vector_store %arg4[%c0_70, %c0_71], %220 {strides = array<i32>} : memref<16x32xf32, #tpu.memory_space<vmem>>, vector<16x32xf32>,
    return
  }
}

</mosaic_0001>

<llo_original>
// kernel: tpu_custom_call.1
$region0: #{tpu_custom_call.1}
  #allocation0 [shape = 'u32[]', space=smem, size = 0x4, offset = 0x4, fixed_abs, tag = 'smem constant byte address 0x4 - core index']
  #allocation1 [shape = 'u32[72,128]{1,0:T(1,128)}', space=vmem, size = 0x9000, scoped, tag = 'internal scratch']
  %s0 = inlined_call_operand.vmem [shape: f32[16,32], index: 0, kind: input, shape index: {}]
  %s1 = inlined_call_operand.vmem [shape: f32[32,256], index: 1, kind: input, shape index: {}]
  %s2 = inlined_call_operand.vmem [shape: f32[128,32], index: 2, kind: input, shape index: {}]
  %s3 = inlined_call_operand.vmem [shape: f32[8,128], index: 3, kind: input, shape index: {}]
  %s4 = inlined_call_operand.hbm [shape: f32[16,32], index: 4, kind: output, shape index: {}]
  %s5 = sld [smem:[#allocation0]]
  $region26: #{tpu_custom_call.1} parent=0
    _
  %s7 = ssub.s32 1, %s5
  %s8 = scalar_select 0, %s7, %s5
  $region1: #{tpu_custom_call.1} parent=0
    #allocation2 [shape = 'u8[8192]{0}', space=vmem, size = 0x2000, scoped, tag = 'output window, operand 0, single buffered']
    #allocation3 [shape = 's32[1]{0}', space=sflag, size = 0x4, scoped, tag = 'scoped memory for tpu_custom_call.1']
    %9 = vsyncpa [#allocation3], 0
    // Predicated region
    $region2: #{tpu_custom_call.1} parent=1 // pred_check
      _
    $region3: #{tpu_custom_call.1} parent=1 // pred_check_branch
      %11 = sbr.rel (0) target = $region5
    $region4: #{tpu_custom_call.1} parent=1 // pred_region
      _
    $region5: #{tpu_custom_call.1} parent=1 // pred_fallthru
      _
    // Predicated region
    $region6: #{tpu_custom_call.1} parent=1 // pred_check
      _
    $region7: #{tpu_custom_call.1} parent=1 // pred_check_branch
      %13 = sbr.rel (0) target = $region9
    $region8: #{tpu_custom_call.1} parent=1 // pred_region
      _
    $region9: #{tpu_custom_call.1} parent=1 // pred_fallthru
      _
    // Predicated region
    $region10: #{tpu_custom_call.1} parent=1 // pred_check
      _
    $region11: #{tpu_custom_call.1} parent=1 // pred_check_branch
      %15 = sbr.rel (0) target = $region13
    $region12: #{tpu_custom_call.1} parent=1 // pred_region
      _
    $region13: #{tpu_custom_call.1} parent=1 // pred_fallthru
      _
    // Predicated region
    $region14: #{tpu_custom_call.1} parent=1 // pred_check
      _
    $region15: #{tpu_custom_call.1} parent=1 // pred_check_branch
      %17 = sbr.rel (0) target = $region17
    $region16: #{tpu_custom_call.1} parent=1 // pred_region
      _
    $region17: #{tpu_custom_call.1} parent=1 // pred_fallthru
      _
    %v18 = vld [vmem:[%s0] sm:$0xff]
    %v19 = vld [vmem:[%s0 + $0x8] sm:$0xff]
    %v20 = vld [vmem:[%s3] sm:$0xff]
    %v21 = vld [vmem:[%s1] sm:$0xff]
    %v22 = vld [vmem:[%s1 + $0x10] sm:$0xff]
    %v23 = vld [vmem:[%s1 + $0x20] sm:$0xff]
    %v24 = vld [vmem:[%s1 + $0x30] sm:$0xff]
    %v25 = vld [vmem:[%s1 + $0x8] sm:$0xff]
    %v26 = vld [vmem:[%s1 + $0x18] sm:$0xff]
    %v27 = vld [vmem:[%s1 + $0x28] sm:$0xff]
    %v28 = vld [vmem:[%s1 + $0x38] sm:$0xff]
    %vm29 = vcmask 261120
    %v30 = vsel %vm29, %v18, 0.0
    %31 = vadd.xlane.f32.xlu0 %v30
    %v32 = vpop.xlane.xlu0 %31
    %v33 = vsel %vm29, %v19, 0.0
    %34 = vadd.xlane.f32.xlu0 %v33
    %v35 = vpop.xlane.xlu0 %34
    %v36 = vrcp.pop 32.0
    %v37 = vmul.f32 32.0, %v36
    %v38 = vsub.f32 1.0, %v37
    %v39 = vmul.f32 %v36, %v38
    %v40 = vadd.f32 %v36, %v39
    %vm41 = vweird.f32 %v36
    %v42 = vsel %vm41, %v36, %v40
    %v43 = vmul.f32 %v32, %v42
    %v44 = vmul.f32 %v35, %v42
    %v45 = vsub.f32 %v18, %v43
    %v46 = vsub.f32 %v19, %v44
    %v47 = vmul.f32 %v45, %v45
    %v48 = vmul.f32 %v46, %v46
    %v49 = vsel %vm29, %v47, 0.0
    %50 = vadd.xlane.f32.xlu0 %v49
    %v51 = vpop.xlane.xlu0 %50
    %v52 = vsel %vm29, %v48, 0.0
    %53 = vadd.xlane.f32.xlu0 %v52
    %v54 = vpop.xlane.xlu0 %53
    %v55 = vmul.f32 %v51, %v42
    %v56 = vmul.f32 %v54, %v42
    %v57 = vadd.f32 %v55, 1e-05
    %v58 = vadd.f32 %v56, 1e-05
    %v59 = vrsqrt.pop %v57
    %v60 = vmul.f32 %v59, %v57
    %v61 = vmul.f32 %v60, %v59
    %v62 = vmul.f32 0.5, %v61
    %v63 = vsub.f32 1.5, %v62
    %v64 = vmul.f32 %v59, %v63
    %vm65 = vweird.f32 %v57
    %vm66 = vweird.f32 %v59
    %vm67 = vmor %vm65, %vm66
    %v68 = vsel %vm67, %v59, %v64
    %v69 = vrsqrt.pop %v58
    %v70 = vmul.f32 %v69, %v58
    %v71 = vmul.f32 %v70, %v69
    %v72 = vmul.f32 0.5, %v71
    %v73 = vsub.f32 1.5, %v72
    %v74 = vmul.f32 %v69, %v73
    %vm75 = vweird.f32 %v58
    %vm76 = vweird.f32 %v69
    %vm77 = vmor %vm75, %vm76
    %v78 = vsel %vm77, %v69, %v74
    %v79 = vmul.f32 %v45, %v68
    %v80 = vmul.f32 %v46, %v78
    %v81 = vperm.slane %v20, 0
    %v82 = vmul.f32 %v79, %v81
    %v83 = vmul.f32 %v80, %v81
    %v84 = vperm.slane %v20, 1
    %v85 = vadd.f32 %v82, %v84
    %v86 = vadd.f32 %v83, %v84
    %v88 = vsel %vm29, %v85, 0
    %v91 = vsel %vm29, %v86, 0
    %93 = vmatpush.msra.mxu0 0.0
    %94 = vmatpush.msra.mxu0 0.0
    %95 = vmatpush.msra.mxu0 0.0
    %96 = vmatpush.msra.mxu0 0.0
    %97 = vmatpush.msra.mxu0 0.0
    %98 = vmatpush.msra.mxu0 0.0
    %99 = vmatpush.msra.mxu0 0.0
    %100 = vmatpush.msra.mxu0 0.0
    %101 = vmatpush.msra.mxu0 0.0
    %102 = vmatpush.msra.mxu0 0.0
    %103 = vmatpush.msra.mxu0 0.0
    %104 = vmatpush.msra.mxu0 0.0
    %105 = vmatpush.msra.mxu0 %v24
    %106 = vmatpush.msra.mxu0 %v23
    %107 = vmatpush.msra.mxu0 %v22
    %108 = vmatpush.msra.mxu0 %v21
    %109 = vmatmul.f32.gmra.mxu0 %v88
    %v110 = vpop.f32.mrf.mxu0
    %v111 = vadd.f32 0.0, %v110
    %112 = vmatmul.f32.gmra.mxu0 %v91
    %v113 = vpop.f32.mrf.mxu0
    %v114 = vadd.f32 0.0, %v113
    %115 = vdwg.mxu0
    %v116 = vlaneseq
    %v117 = vshrl.u32 %v116, 7
    %v118 = vlaneseq
    %v119 = vand.u32 %v118, 127
    %vm120 = vcmp.ge.s32.totalorder %v117, %v119
    %122 = vrot.lane.b32.xlu0 %v111, 96
    %v123 = vpop.permute.xlu0 %122
    %vm124 = vcmask 64512
    %v125 = vsel %vm124, %v111, 0
    %v127 = vsel %vm124, %v123, 0
    %129 = vmatpush.xpose.msra.mxu0 0.0
    %130 = vmatpush.xpose.msra.mxu0 0.0
    %131 = vmatpush.xpose.msra.mxu0 0.0
    %132 = vmatpush.xpose.msra.mxu0 0.0
    %133 = vmatpush.xpose.msra.mxu0 0.0
    %134 = vmatpush.xpose.msra.mxu0 0.0
    %135 = vmatpush.xpose.msra.mxu0 0.0
    %136 = vmatpush.xpose.msra.mxu0 0.0
    %137 = vmatpush.xpose.msra.mxu0 0.0
    %138 = vmatpush.xpose.msra.mxu0 0.0
    %139 = vmatpush.xpose.msra.mxu0 0.0
    %140 = vmatpush.xpose.msra.mxu0 0.0
    %141 = vmatpush.xpose.msra.mxu0 0.0
    %142 = vmatpush.xpose.msra.mxu0 0.0
    %143 = vmatpush.xpose.msra.mxu0 0.0
    %144 = vmatpush.xpose.msra.mxu0 %v127
    %145 = vmatmul.f32.gmra.mxu0 %v125
    %v146 = vpop.f32.mrf.mxu0
    %v147 = vadd.f32 0.0, %v146
    %148 = vdwg.mxu0
    %v149 = vmul.f32 %v147, 0.17677669
    %v150 = vsel %vm120, %v149, -1e+30
    %v151 = vsel %vm124, %v150, -inf
    %152 = vmax.xlane.f32.xlu0 %v151
    %v153 = vpop.xlane.xlu0 %152
    %v154 = vsub.f32 %v150, %v153
    %v155 = vmul.f32 %v154, 1.442695
    %v156 = vpow.pop %v155
    %v157 = vsel %vm124, %v156, 0.0
    %158 = vadd.xlane.f32.xlu0 %v157
    %v159 = vpop.xlane.xlu0 %158
    %v160 = vrcp.pop %v159
    %v161 = vmul.f32 %v159, %v160
    %v162 = vsub.f32 1.0, %v161
    %v163 = vmul.f32 %v160, %v162
    %v164 = vadd.f32 %v160, %v163
    %vm165 = vweird.f32 %v159
    %vm166 = vweird.f32 %v160
    %vm167 = vmor %vm165, %vm166
    %v168 = vsel %vm167, %v160, %v164
    %v169 = vand.u32 2147483647, %v159
    %vm170 = vcmp.eq.f32.partialorder %v169, 8.507059e+37
    %v171 = vand.u32 %v159, 2147483648
    %v172 = vor.u32 1.1754944e-38, %v171
    %v173 = vsel %vm170, %v172, %v168
    %v174 = vmul.f32 %v156, %v173
    %175 = vrot.lane.b32.xlu0 %v111, 64
    %v176 = vpop.permute.xlu0 %175
    %v179 = vsel %vm124, %v174, 0
    %181 = vmatpush.msra.mxu0 0.0
    %182 = vmatpush.msra.mxu0 0.0
    %183 = vmatpush.msra.mxu0 0.0
    %184 = vmatpush.msra.mxu0 0.0
    %185 = vmatpush.msra.mxu0 0.0
    %186 = vmatpush.msra.mxu0 0.0
    %187 = vmatpush.msra.mxu0 0.0
    %188 = vmatpush.msra.mxu0 0.0
    %189 = vmatpush.msra.mxu0 0.0
    %190 = vmatpush.msra.mxu0 0.0
    %191 = vmatpush.msra.mxu0 0.0
    %192 = vmatpush.msra.mxu0 0.0
    %193 = vmatpush.msra.mxu0 0.0
    %194 = vmatpush.msra.mxu0 0.0
    %195 = vmatpush.msra.mxu0 0.0
    %196 = vmatpush.msra.mxu0 %v176
    %197 = vmatmul.f32.gmra.mxu0 %v179
    %v198 = vpop.f32.mrf.mxu0
    %v199 = vadd.f32 0.0, %v198
    %200 = vdwg.mxu0
    %201 = vrot.lane.b32.xlu0 %v111, 120
    %v202 = vpop.permute.xlu0 %201
    %203 = vrot.lane.b32.xlu0 %v111, 88
    %v204 = vpop.permute.xlu0 %203
    %v205 = vsel %vm124, %v202, 0
    %v207 = vsel %vm124, %v204, 0
    %209 = vmatpush.xpose.msra.mxu0 0.0
    %210 = vmatpush.xpose.msra.mxu0 0.0
    %211 = vmatpush.xpose.msra.mxu0 0.0
    %212 = vmatpush.xpose.msra.mxu0 0.0
    %213 = vmatpush.xpose.msra.mxu0 0.0
    %214 = vmatpush.xpose.msra.mxu0 0.0
    %215 = vmatpush.xpose.msra.mxu0 0.0
    %216 = vmatpush.xpose.msra.mxu0 0.0
    %217 = vmatpush.xpose.msra.mxu0 0.0
    %218 = vmatpush.xpose.msra.mxu0 0.0
    %219 = vmatpush.xpose.msra.mxu0 0.0
    %220 = vmatpush.xpose.msra.mxu0 0.0
    %221 = vmatpush.xpose.msra.mxu0 0.0
    %222 = vmatpush.xpose.msra.mxu0 0.0
    %223 = vmatpush.xpose.msra.mxu0 0.0
    %224 = vmatpush.xpose.msra.mxu0 %v207
    %225 = vmatmul.f32.gmra.mxu0 %v205
    %v226 = vpop.f32.mrf.mxu0
    %v227 = vadd.f32 0.0, %v226
    %228 = vdwg.mxu0
    %v229 = vmul.f32 %v227, 0.17677669
    %v230 = vsel %vm120, %v229, -1e+30
    %v231 = vsel %vm124, %v230, -inf
    %232 = vmax.xlane.f32.xlu0 %v231
    %v233 = vpop.xlane.xlu0 %232
    %v234 = vsub.f32 %v230, %v233
    %v235 = vmul.f32 %v234, 1.442695
    %v236 = vpow.pop %v235
    %v237 = vsel %vm124, %v236, 0.0
    %238 = vadd.xlane.f32.xlu0 %v237
    %v239 = vpop.xlane.xlu0 %238
    %v240 = vrcp.pop %v239
    %v241 = vmul.f32 %v239, %v240
    %v242 = vsub.f32 1.0, %v241
    %v243 = vmul.f32 %v240, %v242
    %v244 = vadd.f32 %v240, %v243
    %vm245 = vweird.f32 %v239
    %vm246 = vweird.f32 %v240
    %vm247 = vmor %vm245, %vm246
    %v248 = vsel %vm247, %v240, %v244
    %v249 = vand.u32 2147483647, %v239
    %vm250 = vcmp.eq.f32.partialorder %v249, 8.507059e+37
    %v251 = vand.u32 %v239, 2147483648
    %v252 = vor.u32 1.1754944e-38, %v251
    %v253 = vsel %vm250, %v252, %v248
    %v254 = vmul.f32 %v236, %v253
    %255 = vrot.lane.b32.xlu0 %v111, 56
    %v256 = vpop.permute.xlu0 %255
    %v259 = vsel %vm124, %v254, 0
    %261 = vmatpush.msra.mxu0 0.0
    %262 = vmatpush.msra.mxu0 0.0
    %263 = vmatpush.msra.mxu0 0.0
    %264 = vmatpush.msra.mxu0 0.0
    %265 = vmatpush.msra.mxu0 0.0
    %266 = vmatpush.msra.mxu0 0.0
    %267 = vmatpush.msra.mxu0 0.0
    %268 = vmatpush.msra.mxu0 0.0
    %269 = vmatpush.msra.mxu0 0.0
    %270 = vmatpush.msra.mxu0 0.0
    %271 = vmatpush.msra.mxu0 0.0
    %272 = vmatpush.msra.mxu0 0.0
    %273 = vmatpush.msra.mxu0 0.0
    %274 = vmatpush.msra.mxu0 0.0
    %275 = vmatpush.msra.mxu0 0.0
    %276 = vmatpush.msra.mxu0 %v256
    %277 = vmatmul.f32.gmra.mxu0 %v259
    %v278 = vpop.f32.mrf.mxu0
    %v279 = vadd.f32 0.0, %v278
    %280 = vdwg.mxu0
    %281 = vrot.lane.b32.xlu0 %v111, 112
    %v282 = vpop.permute.xlu0 %281
    %283 = vrot.lane.b32.xlu0 %v111, 80
    %v284 = vpop.permute.xlu0 %283
    %v285 = vsel %vm124, %v282, 0
    %v287 = vsel %vm124, %v284, 0
    %289 = vmatpush.xpose.msra.mxu0 0.0
    %290 = vmatpush.xpose.msra.mxu0 0.0
    %291 = vmatpush.xpose.msra.mxu0 0.0
    %292 = vmatpush.xpose.msra.mxu0 0.0
    %293 = vmatpush.xpose.msra.mxu0 0.0
    %294 = vmatpush.xpose.msra.mxu0 0.0
    %295 = vmatpush.xpose.msra.mxu0 0.0
    %296 = vmatpush.xpose.msra.mxu0 0.0
    %297 = vmatpush.xpose.msra.mxu0 0.0
    %298 = vmatpush.xpose.msra.mxu0 0.0
    %299 = vmatpush.xpose.msra.mxu0 0.0
    %300 = vmatpush.xpose.msra.mxu0 0.0
    %301 = vmatpush.xpose.msra.mxu0 0.0
    %302 = vmatpush.xpose.msra.mxu0 0.0
    %303 = vmatpush.xpose.msra.mxu0 0.0
    %304 = vmatpush.xpose.msra.mxu0 %v287
    %305 = vmatmul.f32.gmra.mxu0 %v285
    %v306 = vpop.f32.mrf.mxu0
    %v307 = vadd.f32 0.0, %v306
    %308 = vdwg.mxu0
    %v309 = vmul.f32 %v307, 0.17677669
    %v310 = vsel %vm120, %v309, -1e+30
    %v311 = vsel %vm124, %v310, -inf
    %312 = vmax.xlane.f32.xlu0 %v311
    %v313 = vpop.xlane.xlu0 %312
    %v314 = vsub.f32 %v310, %v313
    %v315 = vmul.f32 %v314, 1.442695
    %v316 = vpow.pop %v315
    %v317 = vsel %vm124, %v316, 0.0
    %318 = vadd.xlane.f32.xlu0 %v317
    %v319 = vpop.xlane.xlu0 %318
    %v320 = vrcp.pop %v319
    %v321 = vmul.f32 %v319, %v320
    %v322 = vsub.f32 1.0, %v321
    %v323 = vmul.f32 %v320, %v322
    %v324 = vadd.f32 %v320, %v323
    %vm325 = vweird.f32 %v319
    %vm326 = vweird.f32 %v320
    %vm327 = vmor %vm325, %vm326
    %v328 = vsel %vm327, %v320, %v324
    %v329 = vand.u32 2147483647, %v319
    %vm330 = vcmp.eq.f32.partialorder %v329, 8.507059e+37
    %v331 = vand.u32 %v319, 2147483648
    %v332 = vor.u32 1.1754944e-38, %v331
    %v333 = vsel %vm330, %v332, %v328
    %v334 = vmul.f32 %v316, %v333
    %335 = vrot.lane.b32.xlu0 %v111, 48
    %v336 = vpop.permute.xlu0 %335
    %v339 = vsel %vm124, %v334, 0
    %341 = vmatpush.msra.mxu0 0.0
    %342 = vmatpush.msra.mxu0 0.0
    %343 = vmatpush.msra.mxu0 0.0
    %344 = vmatpush.msra.mxu0 0.0
    %345 = vmatpush.msra.mxu0 0.0
    %346 = vmatpush.msra.mxu0 0.0
    %347 = vmatpush.msra.mxu0 0.0
    %348 = vmatpush.msra.mxu0 0.0
    %349 = vmatpush.msra.mxu0 0.0
    %350 = vmatpush.msra.mxu0 0.0
    %351 = vmatpush.msra.mxu0 0.0
    %352 = vmatpush.msra.mxu0 0.0
    %353 = vmatpush.msra.mxu0 0.0
    %354 = vmatpush.msra.mxu0 0.0
    %355 = vmatpush.msra.mxu0 0.0
    %356 = vmatpush.msra.mxu0 %v336
    %357 = vmatmul.f32.gmra.mxu0 %v339
    %v358 = vpop.f32.mrf.mxu0
    %v359 = vadd.f32 0.0, %v358
    %360 = vdwg.mxu0
    %361 = vrot.lane.b32.xlu0 %v111, 104
    %v362 = vpop.permute.xlu0 %361
    %363 = vrot.lane.b32.xlu0 %v111, 72
    %v364 = vpop.permute.xlu0 %363
    %v365 = vsel %vm124, %v362, 0
    %v367 = vsel %vm124, %v364, 0
    %369 = vmatpush.xpose.msra.mxu0 0.0
    %370 = vmatpush.xpose.msra.mxu0 0.0
    %371 = vmatpush.xpose.msra.mxu0 0.0
    %372 = vmatpush.xpose.msra.mxu0 0.0
    %373 = vmatpush.xpose.msra.mxu0 0.0
    %374 = vmatpush.xpose.msra.mxu0 0.0
    %375 = vmatpush.xpose.msra.mxu0 0.0
    %376 = vmatpush.xpose.msra.mxu0 0.0
    %377 = vmatpush.xpose.msra.mxu0 0.0
    %378 = vmatpush.xpose.msra.mxu0 0.0
    %379 = vmatpush.xpose.msra.mxu0 0.0
    %380 = vmatpush.xpose.msra.mxu0 0.0
    %381 = vmatpush.xpose.msra.mxu0 0.0
    %382 = vmatpush.xpose.msra.mxu0 0.0
    %383 = vmatpush.xpose.msra.mxu0 0.0
    %384 = vmatpush.xpose.msra.mxu0 %v367
    %385 = vmatmul.f32.gmra.mxu0 %v365
    %v386 = vpop.f32.mrf.mxu0
    %v387 = vadd.f32 0.0, %v386
    %388 = vdwg.mxu0
    %v389 = vmul.f32 %v387, 0.17677669
    %v390 = vsel %vm120, %v389, -1e+30
    %v391 = vsel %vm124, %v390, -inf
    %392 = vmax.xlane.f32.xlu0 %v391
    %v393 = vpop.xlane.xlu0 %392
    %v394 = vsub.f32 %v390, %v393
    %v395 = vmul.f32 %v394, 1.442695
    %v396 = vpow.pop %v395
    %v397 = vsel %vm124, %v396, 0.0
    %398 = vadd.xlane.f32.xlu0 %v397
    %v399 = vpop.xlane.xlu0 %398
    %v400 = vrcp.pop %v399
    %v401 = vmul.f32 %v399, %v400
    %v402 = vsub.f32 1.0, %v401
    %v403 = vmul.f32 %v400, %v402
    %v404 = vadd.f32 %v400, %v403
    %vm405 = vweird.f32 %v399
    %vm406 = vweird.f32 %v400
    %vm407 = vmor %vm405, %vm406
    %v408 = vsel %vm407, %v400, %v404
    %v409 = vand.u32 2147483647, %v399
    %vm410 = vcmp.eq.f32.partialorder %v409, 8.507059e+37
    %v411 = vand.u32 %v399, 2147483648
    %v412 = vor.u32 1.1754944e-38, %v411
    %v413 = vsel %vm410, %v412, %v408
    %v414 = vmul.f32 %v396, %v413
    %415 = vrot.lane.b32.xlu0 %v111, 40
    %v416 = vpop.permute.xlu0 %415
    %v419 = vsel %vm124, %v414, 0
    %421 = vmatpush.msra.mxu0 0.0
    %422 = vmatpush.msra.mxu0 0.0
    %423 = vmatpush.msra.mxu0 0.0
    %424 = vmatpush.msra.mxu0 0.0
    %425 = vmatpush.msra.mxu0 0.0
    %426 = vmatpush.msra.mxu0 0.0
    %427 = vmatpush.msra.mxu0 0.0
    %428 = vmatpush.msra.mxu0 0.0
    %429 = vmatpush.msra.mxu0 0.0
    %430 = vmatpush.msra.mxu0 0.0
    %431 = vmatpush.msra.mxu0 0.0
    %432 = vmatpush.msra.mxu0 0.0
    %433 = vmatpush.msra.mxu0 0.0
    %434 = vmatpush.msra.mxu0 0.0
    %435 = vmatpush.msra.mxu0 0.0
    %436 = vmatpush.msra.mxu0 %v416
    %437 = vmatmul.f32.gmra.mxu0 %v419
    %v438 = vpop.f32.mrf.mxu0
    %v439 = vadd.f32 0.0, %v438
    %440 = vdwg.mxu0
    %442 = vrot.lane.b32.xlu0 %v279, 8
    %v443 = vpop.permute.xlu0 %442
    %446 = vrot.lane.b32.xlu0 %v359, 16
    %v447 = vpop.permute.xlu0 %446
    %450 = vrot.lane.b32.xlu0 %v439, 24
    %v451 = vpop.permute.xlu0 %450
    %v453 = vsel %vm124, %v199, %v443
    %vm454 = vcmask 130048
    %v455 = vsel %vm454, %v453, %v447
    %vm456 = vcmask 195584
    %v457 = vsel %vm456, %v455, %v451
    %459 = vrot.lane.b32.xlu0 %v114, 96
    %v460 = vpop.permute.xlu0 %459
    %v461 = vsel %vm124, %v114, 0
    %v463 = vsel %vm124, %v460, 0
    %465 = vmatpush.xpose.msra.mxu0 0.0
    %466 = vmatpush.xpose.msra.mxu0 0.0
    %467 = vmatpush.xpose.msra.mxu0 0.0
    %468 = vmatpush.xpose.msra.mxu0 0.0
    %469 = vmatpush.xpose.msra.mxu0 0.0
    %470 = vmatpush.xpose.msra.mxu0 0.0
    %471 = vmatpush.xpose.msra.mxu0 0.0
    %472 = vmatpush.xpose.msra.mxu0 0.0
    %473 = vmatpush.xpose.msra.mxu0 0.0
    %474 = vmatpush.xpose.msra.mxu0 0.0
    %475 = vmatpush.xpose.msra.mxu0 0.0
    %476 = vmatpush.xpose.msra.mxu0 0.0
    %477 = vmatpush.xpose.msra.mxu0 0.0
    %478 = vmatpush.xpose.msra.mxu0 0.0
    %479 = vmatpush.xpose.msra.mxu0 0.0
    %480 = vmatpush.xpose.msra.mxu0 %v463
    %481 = vmatmul.f32.gmra.mxu0 %v461
    %v482 = vpop.f32.mrf.mxu0
    %v483 = vadd.f32 0.0, %v482
    %484 = vdwg.mxu0
    %v485 = vmul.f32 %v483, 0.17677669
    %v486 = vsel %vm120, %v485, -1e+30
    %v487 = vsel %vm124, %v486, -inf
    %488 = vmax.xlane.f32.xlu0 %v487
    %v489 = vpop.xlane.xlu0 %488
    %v490 = vsub.f32 %v486, %v489
    %v491 = vmul.f32 %v490, 1.442695
    %v492 = vpow.pop %v491
    %v493 = vsel %vm124, %v492, 0.0
    %494 = vadd.xlane.f32.xlu0 %v493
    %v495 = vpop.xlane.xlu0 %494
    %v496 = vrcp.pop %v495
    %v497 = vmul.f32 %v495, %v496
    %v498 = vsub.f32 1.0, %v497
    %v499 = vmul.f32 %v496, %v498
    %v500 = vadd.f32 %v496, %v499
    %vm501 = vweird.f32 %v495
    %vm502 = vweird.f32 %v496
    %vm503 = vmor %vm501, %vm502
    %v504 = vsel %vm503, %v496, %v500
    %v505 = vand.u32 2147483647, %v495
    %vm506 = vcmp.eq.f32.partialorder %v505, 8.507059e+37
    %v507 = vand.u32 %v495, 2147483648
    %v508 = vor.u32 1.1754944e-38, %v507
    %v509 = vsel %vm506, %v508, %v504
    %v510 = vmul.f32 %v492, %v509
    %511 = vrot.lane.b32.xlu0 %v114, 64
    %v512 = vpop.permute.xlu0 %511
    %v515 = vsel %vm124, %v510, 0
    %517 = vmatpush.msra.mxu0 0.0
    %518 = vmatpush.msra.mxu0 0.0
    %519 = vmatpush.msra.mxu0 0.0
    %520 = vmatpush.msra.mxu0 0.0
    %521 = vmatpush.msra.mxu0 0.0
    %522 = vmatpush.msra.mxu0 0.0
    %523 = vmatpush.msra.mxu0 0.0
    %524 = vmatpush.msra.mxu0 0.0
    %525 = vmatpush.msra.mxu0 0.0
    %526 = vmatpush.msra.mxu0 0.0
    %527 = vmatpush.msra.mxu0 0.0
    %528 = vmatpush.msra.mxu0 0.0
    %529 = vmatpush.msra.mxu0 0.0
    %530 = vmatpush.msra.mxu0 0.0
    %531 = vmatpush.msra.mxu0 0.0
    %532 = vmatpush.msra.mxu0 %v512
    %533 = vmatmul.f32.gmra.mxu0 %v515
    %v534 = vpop.f32.mrf.mxu0
    %v535 = vadd.f32 0.0, %v534
    %536 = vdwg.mxu0
    %537 = vrot.lane.b32.xlu0 %v114, 120
    %v538 = vpop.permute.xlu0 %537
    %539 = vrot.lane.b32.xlu0 %v114, 88
    %v540 = vpop.permute.xlu0 %539
    %v541 = vsel %vm124, %v538, 0
    %v543 = vsel %vm124, %v540, 0
    %545 = vmatpush.xpose.msra.mxu0 0.0
    %546 = vmatpush.xpose.msra.mxu0 0.0
    %547 = vmatpush.xpose.msra.mxu0 0.0
    %548 = vmatpush.xpose.msra.mxu0 0.0
    %549 = vmatpush.xpose.msra.mxu0 0.0
    %550 = vmatpush.xpose.msra.mxu0 0.0
    %551 = vmatpush.xpose.msra.mxu0 0.0
    %552 = vmatpush.xpose.msra.mxu0 0.0
    %553 = vmatpush.xpose.msra.mxu0 0.0
    %554 = vmatpush.xpose.msra.mxu0 0.0
    %555 = vmatpush.xpose.msra.mxu0 0.0
    %556 = vmatpush.xpose.msra.mxu0 0.0
    %557 = vmatpush.xpose.msra.mxu0 0.0
    %558 = vmatpush.xpose.msra.mxu0 0.0
    %559 = vmatpush.xpose.msra.mxu0 0.0
    %560 = vmatpush.xpose.msra.mxu0 %v543
    %561 = vmatmul.f32.gmra.mxu0 %v541
    %v562 = vpop.f32.mrf.mxu0
    %v563 = vadd.f32 0.0, %v562
    %564 = vdwg.mxu0
    %v565 = vmul.f32 %v563, 0.17677669
    %v566 = vsel %vm120, %v565, -1e+30
    %v567 = vsel %vm124, %v566, -inf
    %568 = vmax.xlane.f32.xlu0 %v567
    %v569 = vpop.xlane.xlu0 %568
    %v570 = vsub.f32 %v566, %v569
    %v571 = vmul.f32 %v570, 1.442695
    %v572 = vpow.pop %v571
    %v573 = vsel %vm124, %v572, 0.0
    %574 = vadd.xlane.f32.xlu0 %v573
    %v575 = vpop.xlane.xlu0 %574
    %v576 = vrcp.pop %v575
    %v577 = vmul.f32 %v575, %v576
    %v578 = vsub.f32 1.0, %v577
    %v579 = vmul.f32 %v576, %v578
    %v580 = vadd.f32 %v576, %v579
    %vm581 = vweird.f32 %v575
    %vm582 = vweird.f32 %v576
    %vm583 = vmor %vm581, %vm582
    %v584 = vsel %vm583, %v576, %v580
    %v585 = vand.u32 2147483647, %v575
    %vm586 = vcmp.eq.f32.partialorder %v585, 8.507059e+37
    %v587 = vand.u32 %v575, 2147483648
    %v588 = vor.u32 1.1754944e-38, %v587
    %v589 = vsel %vm586, %v588, %v584
    %v590 = vmul.f32 %v572, %v589
    %591 = vrot.lane.b32.xlu0 %v114, 56
    %v592 = vpop.permute.xlu0 %591
    %v595 = vsel %vm124, %v590, 0
    %597 = vmatpush.msra.mxu0 0.0
    %598 = vmatpush.msra.mxu0 0.0
    %599 = vmatpush.msra.mxu0 0.0
    %600 = vmatpush.msra.mxu0 0.0
    %601 = vmatpush.msra.mxu0 0.0
    %602 = vmatpush.msra.mxu0 0.0
    %603 = vmatpush.msra.mxu0 0.0
    %604 = vmatpush.msra.mxu0 0.0
    %605 = vmatpush.msra.mxu0 0.0
    %606 = vmatpush.msra.mxu0 0.0
    %607 = vmatpush.msra.mxu0 0.0
    %608 = vmatpush.msra.mxu0 0.0
    %609 = vmatpush.msra.mxu0 0.0
    %610 = vmatpush.msra.mxu0 0.0
    %611 = vmatpush.msra.mxu0 0.0
    %612 = vmatpush.msra.mxu0 %v592
    %613 = vmatmul.f32.gmra.mxu0 %v595
    %v614 = vpop.f32.mrf.mxu0
    %v615 = vadd.f32 0.0, %v614
    %616 = vdwg.mxu0
    %617 = vrot.lane.b32.xlu0 %v114, 112
    %v618 = vpop.permute.xlu0 %617
    %619 = vrot.lane.b32.xlu0 %v114, 80
    %v620 = vpop.permute.xlu0 %619
    %v621 = vsel %vm124, %v618, 0
    %v623 = vsel %vm124, %v620, 0
    %625 = vmatpush.xpose.msra.mxu0 0.0
    %626 = vmatpush.xpose.msra.mxu0 0.0
    %627 = vmatpush.xpose.msra.mxu0 0.0
    %628 = vmatpush.xpose.msra.mxu0 0.0
    %629 = vmatpush.xpose.msra.mxu0 0.0
    %630 = vmatpush.xpose.msra.mxu0 0.0
    %631 = vmatpush.xpose.msra.mxu0 0.0
    %632 = vmatpush.xpose.msra.mxu0 0.0
    %633 = vmatpush.xpose.msra.mxu0 0.0
    %634 = vmatpush.xpose.msra.mxu0 0.0
    %635 = vmatpush.xpose.msra.mxu0 0.0
    %636 = vmatpush.xpose.msra.mxu0 0.0
    %637 = vmatpush.xpose.msra.mxu0 0.0
    %638 = vmatpush.xpose.msra.mxu0 0.0
    %639 = vmatpush.xpose.msra.mxu0 0.0
    %640 = vmatpush.xpose.msra.mxu0 %v623
    %641 = vmatmul.f32.gmra.mxu0 %v621
    %v642 = vpop.f32.mrf.mxu0
    %v643 = vadd.f32 0.0, %v642
    %644 = vdwg.mxu0
    %v645 = vmul.f32 %v643, 0.17677669
    %v646 = vsel %vm120, %v645, -1e+30
    %v647 = vsel %vm124, %v646, -inf
    %648 = vmax.xlane.f32.xlu0 %v647
    %v649 = vpop.xlane.xlu0 %648
    %v650 = vsub.f32 %v646, %v649
    %v651 = vmul.f32 %v650, 1.442695
    %v652 = vpow.pop %v651
    %v653 = vsel %vm124, %v652, 0.0
    %654 = vadd.xlane.f32.xlu0 %v653
    %v655 = vpop.xlane.xlu0 %654
    %v656 = vrcp.pop %v655
    %v657 = vmul.f32 %v655, %v656
    %v658 = vsub.f32 1.0, %v657
    %v659 = vmul.f32 %v656, %v658
    %v660 = vadd.f32 %v656, %v659
    %vm661 = vweird.f32 %v655
    %vm662 = vweird.f32 %v656
    %vm663 = vmor %vm661, %vm662
    %v664 = vsel %vm663, %v656, %v660
    %v665 = vand.u32 2147483647, %v655
    %vm666 = vcmp.eq.f32.partialorder %v665, 8.507059e+37
    %v667 = vand.u32 %v655, 2147483648
    %v668 = vor.u32 1.1754944e-38, %v667
    %v669 = vsel %vm666, %v668, %v664
    %v670 = vmul.f32 %v652, %v669
    %671 = vrot.lane.b32.xlu0 %v114, 48
    %v672 = vpop.permute.xlu0 %671
    %v675 = vsel %vm124, %v670, 0
    %677 = vmatpush.msra.mxu0 0.0
    %678 = vmatpush.msra.mxu0 0.0
    %679 = vmatpush.msra.mxu0 0.0
    %680 = vmatpush.msra.mxu0 0.0
    %681 = vmatpush.msra.mxu0 0.0
    %682 = vmatpush.msra.mxu0 0.0
    %683 = vmatpush.msra.mxu0 0.0
    %684 = vmatpush.msra.mxu0 0.0
    %685 = vmatpush.msra.mxu0 0.0
    %686 = vmatpush.msra.mxu0 0.0
    %687 = vmatpush.msra.mxu0 0.0
    %688 = vmatpush.msra.mxu0 0.0
    %689 = vmatpush.msra.mxu0 0.0
    %690 = vmatpush.msra.mxu0 0.0
    %691 = vmatpush.msra.mxu0 0.0
    %692 = vmatpush.msra.mxu0 %v672
    %693 = vmatmul.f32.gmra.mxu0 %v675
    %v694 = vpop.f32.mrf.mxu0
    %v695 = vadd.f32 0.0, %v694
    %696 = vdwg.mxu0
    %697 = vrot.lane.b32.xlu0 %v114, 104
    %v698 = vpop.permute.xlu0 %697
    %699 = vrot.lane.b32.xlu0 %v114, 72
    %v700 = vpop.permute.xlu0 %699
    %v701 = vsel %vm124, %v698, 0
    %v703 = vsel %vm124, %v700, 0
    %705 = vmatpush.xpose.msra.mxu0 0.0
    %706 = vmatpush.xpose.msra.mxu0 0.0
    %707 = vmatpush.xpose.msra.mxu0 0.0
    %708 = vmatpush.xpose.msra.mxu0 0.0
    %709 = vmatpush.xpose.msra.mxu0 0.0
    %710 = vmatpush.xpose.msra.mxu0 0.0
    %711 = vmatpush.xpose.msra.mxu0 0.0
    %712 = vmatpush.xpose.msra.mxu0 0.0
    %713 = vmatpush.xpose.msra.mxu0 0.0
    %714 = vmatpush.xpose.msra.mxu0 0.0
    %715 = vmatpush.xpose.msra.mxu0 0.0
    %716 = vmatpush.xpose.msra.mxu0 0.0
    %717 = vmatpush.xpose.msra.mxu0 0.0
    %718 = vmatpush.xpose.msra.mxu0 0.0
    %719 = vmatpush.xpose.msra.mxu0 0.0
    %720 = vmatpush.xpose.msra.mxu0 %v703
    %721 = vmatmul.f32.gmra.mxu0 %v701
    %v722 = vpop.f32.mrf.mxu0
    %v723 = vadd.f32 0.0, %v722
    %724 = vdwg.mxu0
    %v725 = vmul.f32 %v723, 0.17677669
    %v726 = vsel %vm120, %v725, -1e+30
    %v727 = vsel %vm124, %v726, -inf
    %728 = vmax.xlane.f32.xlu0 %v727
    %v729 = vpop.xlane.xlu0 %728
    %v730 = vsub.f32 %v726, %v729
    %v731 = vmul.f32 %v730, 1.442695
    %v732 = vpow.pop %v731
    %v733 = vsel %vm124, %v732, 0.0
    %734 = vadd.xlane.f32.xlu0 %v733
    %v735 = vpop.xlane.xlu0 %734
    %v736 = vrcp.pop %v735
    %v737 = vmul.f32 %v735, %v736
    %v738 = vsub.f32 1.0, %v737
    %v739 = vmul.f32 %v736, %v738
    %v740 = vadd.f32 %v736, %v739
    %vm741 = vweird.f32 %v735
    %vm742 = vweird.f32 %v736
    %vm743 = vmor %vm741, %vm742
    %v744 = vsel %vm743, %v736, %v740
    %v745 = vand.u32 2147483647, %v735
    %vm746 = vcmp.eq.f32.partialorder %v745, 8.507059e+37
    %v747 = vand.u32 %v735, 2147483648
    %v748 = vor.u32 1.1754944e-38, %v747
    %v749 = vsel %vm746, %v748, %v744
    %v750 = vmul.f32 %v732, %v749
    %751 = vrot.lane.b32.xlu0 %v114, 40
    %v752 = vpop.permute.xlu0 %751
    %v755 = vsel %vm124, %v750, 0
    %757 = vmatpush.msra.mxu0 0.0
    %758 = vmatpush.msra.mxu0 0.0
    %759 = vmatpush.msra.mxu0 0.0
    %760 = vmatpush.msra.mxu0 0.0
    %761 = vmatpush.msra.mxu0 0.0
    %762 = vmatpush.msra.mxu0 0.0
    %763 = vmatpush.msra.mxu0 0.0
    %764 = vmatpush.msra.mxu0 0.0
    %765 = vmatpush.msra.mxu0 0.0
    %766 = vmatpush.msra.mxu0 0.0
    %767 = vmatpush.msra.mxu0 0.0
    %768 = vmatpush.msra.mxu0 0.0
    %769 = vmatpush.msra.mxu0 0.0
    %770 = vmatpush.msra.mxu0 0.0
    %771 = vmatpush.msra.mxu0 0.0
    %772 = vmatpush.msra.mxu0 %v752
    %773 = vmatmul.f32.gmra.mxu0 %v755
    %v774 = vpop.f32.mrf.mxu0
    %v775 = vadd.f32 0.0, %v774
    %776 = vdwg.mxu0
    %778 = vrot.lane.b32.xlu0 %v615, 8
    %v779 = vpop.permute.xlu0 %778
    %782 = vrot.lane.b32.xlu0 %v695, 16
    %v783 = vpop.permute.xlu0 %782
    %786 = vrot.lane.b32.xlu0 %v775, 24
    %v787 = vpop.permute.xlu0 %786
    %v789 = vsel %vm124, %v535, %v779
    %v790 = vsel %vm454, %v789, %v783
    %v791 = vsel %vm456, %v790, %v787
    %796 = vrot.lane.b32.xlu0 %v21, 32
    %v797 = vpop.permute.xlu0 %796
    %798 = vrot.lane.b32.xlu0 %v22, 32
    %v799 = vpop.permute.xlu0 %798
    %800 = vrot.lane.b32.xlu0 %v23, 32
    %v801 = vpop.permute.xlu0 %800
    %802 = vrot.lane.b32.xlu0 %v24, 32
    %v803 = vpop.permute.xlu0 %802
    %v809 = vsel %vm29, %v457, 0
    %v812 = vsel %vm29, %v791, 0
    %814 = vmatpush.msra.mxu0 0.0
    %815 = vmatpush.msra.mxu0 0.0
    %816 = vmatpush.msra.mxu0 0.0
    %817 = vmatpush.msra.mxu0 0.0
    %818 = vmatpush.msra.mxu0 0.0
    %819 = vmatpush.msra.mxu0 0.0
    %820 = vmatpush.msra.mxu0 0.0
    %821 = vmatpush.msra.mxu0 0.0
    %822 = vmatpush.msra.mxu0 0.0
    %823 = vmatpush.msra.mxu0 0.0
    %824 = vmatpush.msra.mxu0 0.0
    %825 = vmatpush.msra.mxu0 0.0
    %826 = vmatpush.msra.mxu0 %v803
    %827 = vmatpush.msra.mxu0 %v801
    %828 = vmatpush.msra.mxu0 %v799
    %829 = vmatpush.msra.mxu0 %v797
    %830 = vmatmul.f32.gmra.mxu0 %v809
    %v831 = vpop.f32.mrf.mxu0
    %v832 = vadd.f32 0.0, %v831
    %833 = vmatmul.f32.gmra.mxu0 %v812
    %v834 = vpop.f32.mrf.mxu0
    %v835 = vadd.f32 0.0, %v834
    %836 = vdwg.mxu0
    %v837 = vadd.f32 %v18, %v832
    %v838 = vadd.f32 %v19, %v835
    %v839 = vperm.slane %v20, 4
    %v840 = vadd.f32 %v837, %v839
    %v841 = vadd.f32 %v838, %v839
    %v842 = vsel %vm29, %v840, 0.0
    %843 = vadd.xlane.f32.xlu0 %v842
    %v844 = vpop.xlane.xlu0 %843
    %v845 = vsel %vm29, %v841, 0.0
    %846 = vadd.xlane.f32.xlu0 %v845
    %v847 = vpop.xlane.xlu0 %846
    %v848 = vmul.f32 %v844, %v42
    %v849 = vmul.f32 %v847, %v42
    %v850 = vsub.f32 %v840, %v848
    %v851 = vsub.f32 %v841, %v849
    %v852 = vmul.f32 %v850, %v850
    %v853 = vmul.f32 %v851, %v851
    %v854 = vsel %vm29, %v852, 0.0
    %855 = vadd.xlane.f32.xlu0 %v854
    %v856 = vpop.xlane.xlu0 %855
    %v857 = vsel %vm29, %v853, 0.0
    %858 = vadd.xlane.f32.xlu0 %v857
    %v859 = vpop.xlane.xlu0 %858
    %v860 = vmul.f32 %v856, %v42
    %v861 = vmul.f32 %v859, %v42
    %v862 = vadd.f32 %v860, 1e-05
    %v863 = vadd.f32 %v861, 1e-05
    %v864 = vrsqrt.pop %v862
    %v865 = vmul.f32 %v864, %v862
    %v866 = vmul.f32 %v865, %v864
    %v867 = vmul.f32 0.5, %v866
    %v868 = vsub.f32 1.5, %v867
    %v869 = vmul.f32 %v864, %v868
    %vm870 = vweird.f32 %v862
    %vm871 = vweird.f32 %v864
    %vm872 = vmor %vm870, %vm871
    %v873 = vsel %vm872, %v864, %v869
    %v874 = vrsqrt.pop %v863
    %v875 = vmul.f32 %v874, %v863
    %v876 = vmul.f32 %v875, %v874
    %v877 = vmul.f32 0.5, %v876
    %v878 = vsub.f32 1.5, %v877
    %v879 = vmul.f32 %v874, %v878
    %vm880 = vweird.f32 %v863
    %vm881 = vweird.f32 %v874
    %vm882 = vmor %vm880, %vm881
    %v883 = vsel %vm882, %v874, %v879
    %v884 = vmul.f32 %v850, %v873
    %v885 = vmul.f32 %v851, %v883
    %v886 = vperm.slane %v20, 2
    %v887 = vmul.f32 %v884, %v886
    %v888 = vmul.f32 %v885, %v886
    %v889 = vperm.slane %v20, 3
    %v890 = vadd.f32 %v887, %v889
    %v891 = vadd.f32 %v888, %v889
    %v892 = vperm.slane %v20, 6
    %v894 = vsel %vm29, %v890, 0
    %v897 = vsel %vm29, %v891, 0
    %899 = vmatpush.msra.mxu0 0.0
    %900 = vmatpush.msra.mxu0 0.0
    %901 = vmatpush.msra.mxu0 0.0
    %902 = vmatpush.msra.mxu0 0.0
    %903 = vmatpush.msra.mxu0 0.0
    %904 = vmatpush.msra.mxu0 0.0
    %905 = vmatpush.msra.mxu0 0.0
    %906 = vmatpush.msra.mxu0 0.0
    %907 = vmatpush.msra.mxu0 0.0
    %908 = vmatpush.msra.mxu0 0.0
    %909 = vmatpush.msra.mxu0 0.0
    %910 = vmatpush.msra.mxu0 0.0
    %911 = vmatpush.msra.mxu0 %v28
    %912 = vmatpush.msra.mxu0 %v27
    %913 = vmatpush.msra.mxu0 %v26
    %914 = vmatpush.msra.mxu0 %v25
    %915 = vmatmul.f32.gmra.mxu0 %v894
    %v916 = vpop.f32.mrf.mxu0
    %v917 = vadd.f32 %v892, %v916
    %918 = vmatmul.f32.gmra.mxu0 %v897
    %v919 = vpop.f32.mrf.mxu0
    %v920 = vadd.f32 %v892, %v919
    %921 = vdwg.mxu0
    %v922 = vmax.f32 %v917, 0.0
    %v923 = vmax.f32 %v920, 0.0
    %v924 = vld [vmem:[%s2] sm:$0xff]
    %v925 = vld [vmem:[%s2 + $0x8] sm:$0xff]
    %v926 = vld [vmem:[%s2 + $0x10] sm:$0xff]
    %v927 = vld [vmem:[%s2 + $0x18] sm:$0xff]
    %v928 = vld [vmem:[%s2 + $0x20] sm:$0xff]
    %v929 = vld [vmem:[%s2 + $0x28] sm:$0xff]
    %v930 = vld [vmem:[%s2 + $0x30] sm:$0xff]
    %v931 = vld [vmem:[%s2 + $0x38] sm:$0xff]
    %v932 = vld [vmem:[%s2 + $0x40] sm:$0xff]
    %v933 = vld [vmem:[%s2 + $0x48] sm:$0xff]
    %v934 = vld [vmem:[%s2 + $0x50] sm:$0xff]
    %v935 = vld [vmem:[%s2 + $0x58] sm:$0xff]
    %v936 = vld [vmem:[%s2 + $0x60] sm:$0xff]
    %v937 = vld [vmem:[%s2 + $0x68] sm:$0xff]
    %v938 = vld [vmem:[%s2 + $0x70] sm:$0xff]
    %v939 = vld [vmem:[%s2 + $0x78] sm:$0xff]
    %v940 = vperm.slane %v20, 5
    %941 = vmatpush.msra.mxu0 %v939
    %942 = vmatpush.msra.mxu0 %v938
    %943 = vmatpush.msra.mxu0 %v937
    %944 = vmatpush.msra.mxu0 %v936
    %945 = vmatpush.msra.mxu0 %v935
    %946 = vmatpush.msra.mxu0 %v934
    %947 = vmatpush.msra.mxu0 %v933
    %948 = vmatpush.msra.mxu0 %v932
    %949 = vmatpush.msra.mxu0 %v931
    %950 = vmatpush.msra.mxu0 %v930
    %951 = vmatpush.msra.mxu0 %v929
    %952 = vmatpush.msra.mxu0 %v928
    %953 = vmatpush.msra.mxu0 %v927
    %954 = vmatpush.msra.mxu0 %v926
    %955 = vmatpush.msra.mxu0 %v925
    %956 = vmatpush.msra.mxu0 %v924
    %957 = vmatmul.f32.gmra.mxu0 %v922
    %v958 = vpop.f32.mrf.mxu0
    %v959 = vadd.f32 %v940, %v958
    %960 = vmatmul.f32.gmra.mxu0 %v923
    %v961 = vpop.f32.mrf.mxu0
    %v962 = vadd.f32 %v940, %v961
    %963 = vdwg.mxu0
    %v964 = vadd.f32 %v840, %v959
    %v965 = vadd.f32 %v841, %v962
    %966 = vst.msk [vmem:[#allocation2] sm:$0xff] %vm29, %v964
    %967 = vst.msk [vmem:[#allocation2 + $0x8] sm:$0xff] %vm29, %v965
    // Predicated region
    $region18: #{tpu_custom_call.1} parent=1 // pred_check
      _
    $region19: #{tpu_custom_call.1} parent=1 // pred_check_branch
      %969 = sbr.rel (0) target = $region21
    $region20: #{tpu_custom_call.1} parent=1 // pred_region
      %971 = vsyncadd [#allocation3], 0
      %s972 = sshll.u32 [#allocation2], 4
      %s973 = int_to_ptr.vmem [resolvable:$true] %s972
      %s974 = sshll.u32 %s4, 4
      %s975 = int_to_ptr.hbm [resolvable:$true] %s974
      %980 = dma.vmem_to_hbm [thread:$0]  %s973, 256, %s975, [#allocation3], 128, 128, 8
    $region21: #{tpu_custom_call.1} parent=1 // pred_fallthru
      _
    // Predicated region
    $region22: #{tpu_custom_call.1} parent=1 // pred_check
      _
    $region23: #{tpu_custom_call.1} parent=1 // pred_check_branch
      %982 = sbr.rel (0) target = $region25
    $region24: #{tpu_custom_call.1} parent=1 // pred_region
      %984 = dma.done [#allocation3], 256
    $region25: #{tpu_custom_call.1} parent=1 // pred_fallthru
      _
    %985 = vsyncpa [#allocation3], 1

</llo_original>
